<compile_context>
chip_gen: v7x
topology: tpu7x:2x2x1
jax: 0.10.0
libtpu: 0.0.40
codegen_flags: <defaults>
</compile_context>

<pallas_src>
import jax
import jax.numpy as jnp
from jax.experimental import pallas as pl
from jax.experimental.pallas import tpu as pltpu


def value_kernel(x_ref, p_ref, b2_ref, o_ref):
    # x_ref:  (TB, K)   rollout states, native layout (batch on sublanes)
    # p_ref:  (K+2, H)  rows [0:K] = fc1.weight.T, row K = fc1.bias, row K+1 = out.weight
    # b2_ref: (1,)      out.bias, SMEM scalar
    # o_ref:  (TB, 1)   value estimates
    TB, K = x_ref.shape
    H = p_ref.shape[1]

    x = x_ref[...]                                        # (TB, K)
    p = p_ref[...]                                        # (K+2, H)

    # ---- fc1 as a VPU broadcast-FMA over the tiny contraction dim K ----
    # h[b, j] = b1[j] + sum_k x[b, k] * w1[j, k]
    acc = jnp.broadcast_to(p[K:K + 1, :], (TB, H))        # b1 row, hoisted once
    for k in range(K):                                    # static unroll, K == state_dim
        acc = acc + x[:, k:k + 1] * p[k:k + 1, :]         # (TB,1)*(1,H) -> (TB,H)

    h = jnp.maximum(acc, 0.0)                             # ReLU on the VPU

    # ---- out layer (N=1): multiply + cross-lane reduce (VPU + XLU) ----
    out = jnp.sum(h * p[K + 1:K + 2, :], axis=1, keepdims=True) + b2_ref[0]   # (TB, 1)
    o_ref[...] = out.astype(o_ref.dtype)


def _round_up(a, m):
    return ((a + m - 1) // m) * m


def value_forward(x, w1, b1, w2, b2, *, max_block_b=4096):
    """Forward pass of the Value net.

    x:  [B, state_dim] float32
    w1: [hidden, state_dim]  (fc1.weight, PyTorch layout)
    b1: [hidden]             (fc1.bias)
    w2: [1, hidden]          (out.weight, PyTorch layout)
    b2: [1]                  (out.bias)
    returns [B, 1] float32  ==  relu(x @ w1.T + b1) @ w2.T + b2
    """
    B, K = x.shape
    H, K2 = w1.shape
    assert K2 == K and b1.shape == (H,) and w2.shape == (1, H) and b2.shape == (1,)

    # Adaptive batch tile: single grid step for rollout-sized batches, >=2
    # tiles for large batches (v7x megacore), capped for VMEM headroom.
    b_ceil = _round_up(B, 8)
    if b_ceil <= 2048:
        block_b = b_ceil
    else:
        block_b = min(_round_up(pl.cdiv(B, 2), 8), max_block_b)
    grid_b = pl.cdiv(B, block_b)   # ragged last block: OOB reads padded, OOB writes dropped

    # Fold fc1.weight^T, fc1.bias and out.weight into one resident param block.
    params = jnp.concatenate(
        [w1.T.astype(jnp.float32),
         b1.reshape(1, H).astype(jnp.float32),
         w2.astype(jnp.float32)],
        axis=0)                                            # (K+2, H), tiny

    return pl.pallas_call(
        value_kernel,
        out_shape=jax.ShapeDtypeStruct((B, 1), jnp.float32),
        grid=(grid_b,),
        in_specs=[
            pl.BlockSpec((block_b, K), lambda i: (i, 0)),          # x tile, native layout
            pl.BlockSpec((K + 2, H), lambda i: (0, 0)),            # fused params (resident)
            pl.BlockSpec(memory_space=pltpu.MemorySpace.SMEM),     # out.bias scalar
        ],
        out_specs=pl.BlockSpec((block_b, 1), lambda i: (i, 0)),
        compiler_params=pltpu.CompilerParams(
            dimension_semantics=("parallel",),
            vmem_limit_bytes=32 * 1024 * 1024,
        ),
    )(x.astype(jnp.float32), params, b2.astype(jnp.float32))


def _reference(x, w1, b1, w2, b2):
    return jnp.maximum(x @ w1.T + b1, 0.0) @ w2.T + b2


if __name__ == "__main__":
    key = jax.random.PRNGKey(0)
    k_x1, k_x2, k_x3, k_w1, k_b1, k_w2, k_b2 = jax.random.split(key, 7)

    state_dim = 4
    hidden = 10

    # Parameters in PyTorch layout; weights ~ N(0, 0.1) mirroring the module init.
    w1 = (0.1 * jax.random.normal(k_w1, (hidden, state_dim))).astype(jnp.float32)
    b1 = (0.01 * jax.random.normal(k_b1, (hidden,))).astype(jnp.float32)
    w2 = (0.1 * jax.random.normal(k_w2, (1, hidden))).astype(jnp.float32)
    b2 = (0.01 * jax.random.normal(k_b2, (1,))).astype(jnp.float32)

    # Case 1: tiny batch -> single (8-row) grid step, no padding anywhere.
    x_small = jax.random.normal(k_x1, (8, state_dim), dtype=jnp.float32)
    out_small = jax.block_until_ready(value_forward(x_small, w1, b1, w2, b2))
    assert out_small.shape == (8, 1)
    assert jnp.allclose(out_small, _reference(x_small, w1, b1, w2, b2), atol=1e-5, rtol=1e-5)

    # Case 2: rollout-sized batch -> still a single grid step (block_b == 200).
    x_roll = jax.random.normal(k_x2, (200, state_dim), dtype=jnp.float32)
    out_roll = jax.block_until_ready(value_forward(x_roll, w1, b1, w2, b2))
    assert out_roll.shape == (200, 1)
    assert jnp.allclose(out_roll, _reference(x_roll, w1, b1, w2, b2), atol=1e-5, rtol=1e-5)

    # Case 3: larger batch -> 2 grid steps (parallel axis, both v7x TCs usable).
    x_big = jax.random.normal(k_x3, (6000, state_dim), dtype=jnp.float32)
    out_big = jax.block_until_ready(value_forward(x_big, w1, b1, w2, b2))
    assert out_big.shape == (6000, 1)
    assert jnp.allclose(out_big, _reference(x_big, w1, b1, w2, b2), atol=1e-5, rtol=1e-5)

    print("KERNEL_OK")
</pallas_src>

<mosaic_0001>
module attributes {stable_mosaic.version = 11 : i64} {
  func.func @value_kernel(%arg0: i32, %arg1: memref<8x4xf32, #tpu.memory_space<vmem>>, %arg2: memref<6x10xf32, #tpu.memory_space<vmem>>, %arg3: memref<1xf32, #tpu.memory_space<smem>>, %arg4: memref<8x1xf32, #tpu.memory_space<vmem>>) attributes {dimension_semantics = [#tpu.dimension_semantics<parallel>], iteration_bounds = array<i64: 1>, scalar_prefetch = 0 : i64, scratch_operands = 0 : i64, tpu.core_type = #tpu.core_type<tc>, window_params = [{transform_indices = @transform_0, window_bounds = array<i64: 8, 4>}, {pipeline_mode = #tpu.pipeline_mode<synchronous>, transform_indices = @transform_1, window_bounds = array<i64: 6, 10>}, {transform_indices = @transform_2, window_bounds = array<i64: 1>}, {transform_indices = @transform_3, window_bounds = array<i64: 8, 1>}]} {
    %c0 = arith.constant 0 : index
    %c0_0 = arith.constant 0 : index
    %0 = vector.load %arg1[%c0, %c0_0] : memref<8x4xf32, #tpu.memory_space<vmem>>, vector<8x4xf32>
    %c0_1 = arith.constant 0 : index
    %c0_2 = arith.constant 0 : index
    %1 = vector.load %arg2[%c0_1, %c0_2] : memref<6x10xf32, #tpu.memory_space<vmem>>, vector<6x10xf32>
    %2 = vector.extract_strided_slice %1 {offsets = [4, 0], sizes = [1, 10], strides = [1, 1]} : vector<6x10xf32> to vector<1x10xf32>
    %3 = vector.shape_cast %2 : vector<1x10xf32> to vector<1x10xf32>
    %4 = vector.broadcast %3 : vector<1x10xf32> to vector<8x10xf32>
    %5 = vector.extract_strided_slice %0 {offsets = [0, 0], sizes = [8, 1], strides = [1, 1]} : vector<8x4xf32> to vector<8x1xf32>
    %6 = vector.extract_strided_slice %1 {offsets = [0, 0], sizes = [1, 10], strides = [1, 1]} : vector<6x10xf32> to vector<1x10xf32>
    %7 = vector.broadcast %5 : vector<8x1xf32> to vector<8x10xf32>
    %8 = vector.broadcast %6 : vector<1x10xf32> to vector<8x10xf32>
    %9 = arith.mulf %7, %8 : vector<8x10xf32>
    %10 = arith.addf %4, %9 : vector<8x10xf32>
    %11 = vector.extract_strided_slice %0 {offsets = [0, 1], sizes = [8, 1], strides = [1, 1]} : vector<8x4xf32> to vector<8x1xf32>
    %12 = vector.extract_strided_slice %1 {offsets = [1, 0], sizes = [1, 10], strides = [1, 1]} : vector<6x10xf32> to vector<1x10xf32>
    %13 = vector.broadcast %11 : vector<8x1xf32> to vector<8x10xf32>
    %14 = vector.broadcast %12 : vector<1x10xf32> to vector<8x10xf32>
    %15 = arith.mulf %13, %14 : vector<8x10xf32>
    %16 = arith.addf %10, %15 : vector<8x10xf32>
    %17 = vector.extract_strided_slice %0 {offsets = [0, 2], sizes = [8, 1], strides = [1, 1]} : vector<8x4xf32> to vector<8x1xf32>
    %18 = vector.extract_strided_slice %1 {offsets = [2, 0], sizes = [1, 10], strides = [1, 1]} : vector<6x10xf32> to vector<1x10xf32>
    %19 = vector.broadcast %17 : vector<8x1xf32> to vector<8x10xf32>
    %20 = vector.broadcast %18 : vector<1x10xf32> to vector<8x10xf32>
    %21 = arith.mulf %19, %20 : vector<8x10xf32>
    %22 = arith.addf %16, %21 : vector<8x10xf32>
    %23 = vector.extract_strided_slice %0 {offsets = [0, 3], sizes = [8, 1], strides = [1, 1]} : vector<8x4xf32> to vector<8x1xf32>
    %24 = vector.extract_strided_slice %1 {offsets = [3, 0], sizes = [1, 10], strides = [1, 1]} : vector<6x10xf32> to vector<1x10xf32>
    %25 = vector.broadcast %23 : vector<8x1xf32> to vector<8x10xf32>
    %26 = vector.broadcast %24 : vector<1x10xf32> to vector<8x10xf32>
    %27 = arith.mulf %25, %26 : vector<8x10xf32>
    %28 = arith.addf %22, %27 : vector<8x10xf32>
    %cst = arith.constant 0.000000e+00 : f32
    %29 = vector.broadcast %cst : f32 to vector<8x10xf32>
    %30 = arith.maximumf %28, %29 : vector<8x10xf32>
    %31 = vector.extract_strided_slice %1 {offsets = [5, 0], sizes = [1, 10], strides = [1, 1]} : vector<6x10xf32> to vector<1x10xf32>
    %32 = vector.broadcast %31 : vector<1x10xf32> to vector<8x10xf32>
    %33 = arith.mulf %30, %32 : vector<8x10xf32>
    %cst_3 = arith.constant dense<0.000000e+00> : vector<8xf32>
    %34 = vector.multi_reduction <add>, %33, %cst_3 [1] : vector<8x10xf32> to vector<8xf32>
    %35 = vector.shape_cast %34 : vector<8xf32> to vector<8x1xf32>
    %c0_4 = arith.constant 0 : index
    %36 = memref.load %arg3[%c0_4] : memref<1xf32, #tpu.memory_space<smem>>
    %37 = vector.broadcast %36 : f32 to vector<8x1xf32>
    %38 = arith.addf %35, %37 : vector<8x1xf32>
    %c0_5 = arith.constant 0 : index
    %c0_6 = arith.constant 0 : index
    %39 = vector.load %arg4[%c0_5, %c0_6] : memref<8x1xf32, #tpu.memory_space<vmem>>, vector<8x1xf32>
    tpu.vector_store %arg4[%c0_5, %c0_6], %38 {strides = array<i32>} : memref<8x1xf32, #tpu.memory_space<vmem>>, vector<8x1xf32>,
    return
  }
  func.func @transform_0(%arg0: i32) -> (i32, i32) {
    %c0_i32 = arith.constant 0 : i32
    %c0_i32_0 = arith.constant 0 : i32
    return %arg0, %c0_i32 : i32, i32
  }
  func.func @transform_1(%arg0: i32) -> (i32, i32) {
    %c0_i32 = arith.constant 0 : i32
    %c0_i32_0 = arith.constant 0 : i32
    %c0_i32_1 = arith.constant 0 : i32
    return %c0_i32, %c0_i32_0 : i32, i32
  }
  func.func @transform_2(%arg0: i32) -> i32 {
    %c0_i32 = arith.constant 0 : i32
    %c0_i32_0 = arith.constant 0 : i32
    return %c0_i32 : i32
  }
  func.func @transform_3(%arg0: i32) -> (i32, i32) {
    %c0_i32 = arith.constant 0 : i32
    %c0_i32_0 = arith.constant 0 : i32
    return %arg0, %c0_i32 : i32, i32
  }
}

</mosaic_0001>

<llo_original>
// kernel: tpu_custom_call.1
$region0: #{tpu_custom_call.1}
  #allocation0 [shape = 'u32[]', space=smem, size = 0x4, offset = 0x4, fixed_abs, tag = 'smem constant byte address 0x4 - core index']
  #allocation1 [shape = 'u32[144,128]{1,0:T(1,128)}', space=vmem, size = 0x12000, scoped, tag = 'internal scratch']
  #allocation2 [shape = 'f32[1]{0:T(128)S(6)}', space=smem, size = 0x200, scoped, tag = 'scoped memory for tpu_custom_call.1']
  %s0 = inlined_call_operand.vmem [shape: f32[8,4], index: 0, kind: input, shape index: {}]
  %s1 = inlined_call_operand.vmem [shape: f32[6,10], index: 1, kind: input, shape index: {}]
  %s2 = inlined_call_operand.<no memory space> [shape: f32[1], index: 2, kind: input, shape index: {}]
  %s3 = inlined_call_operand.vmem [shape: f32[8,1], index: 3, kind: output, shape index: {}]
  %s4 = sld [smem:[#allocation0]]
  $region22: #{tpu_custom_call.1} parent=0
    _
  %s6 = ssub.s32 1, %s4
  %s7 = scalar_select 0, %s6, %s4
  %8 = sst [smem:[#allocation2]] %s2
  // Predicated region
  $region2: #{tpu_custom_call.1} parent=0 // pred_check
    _
  $region3: #{tpu_custom_call.1} parent=0 // pred_check_branch
    %10 = sbr.rel (0) target = $region5
  $region4: #{tpu_custom_call.1} parent=0 // pred_region
    _
  $region5: #{tpu_custom_call.1} parent=0 // pred_fallthru
    _
  // Predicated region
  $region6: #{tpu_custom_call.1} parent=0 // pred_check
    _
  $region7: #{tpu_custom_call.1} parent=0 // pred_check_branch
    %12 = sbr.rel (0) target = $region9
  $region8: #{tpu_custom_call.1} parent=0 // pred_region
    _
  $region9: #{tpu_custom_call.1} parent=0 // pred_fallthru
    _
  // Predicated region
  $region10: #{tpu_custom_call.1} parent=0 // pred_check
    _
  $region11: #{tpu_custom_call.1} parent=0 // pred_check_branch
    %14 = sbr.rel (0) target = $region13
  $region12: #{tpu_custom_call.1} parent=0 // pred_region
    _
  $region13: #{tpu_custom_call.1} parent=0 // pred_fallthru
    _
  %v15 = vld [vmem:[%s0] sm:$0xff]
  %v16 = vld [vmem:[%s1] sm:$0x3f]
  %v17 = vlaneseq
  %v18 = vshrl.u32 %v17, 7
  %v19 = vsub.s32 4, %v18
  %v20 = vrot.slane %v16, %v19
  %22 = vset.pattern.permute.xlu0 0
  %23 = vperm.xlu0 %22, %v15
  %v24 = vpop.permute.xlu0 %23
  %v26 = vlaneseq
  %v27 = vshrl.u32 %v26, 7
  %v28 = vsub.s32 0, %v27
  %v29 = vrot.slane %v16, %v28
  %v30 = vmul.f32 %v24, %v29
  %v31 = vadd.f32 %v20, %v30
  %32 = vset.pattern.permute.xlu0 1
  %33 = vperm.xlu0 %32, %v15
  %v34 = vpop.permute.xlu0 %33
  %v36 = vlaneseq
  %v37 = vshrl.u32 %v36, 7
  %v38 = vsub.s32 1, %v37
  %v39 = vrot.slane %v16, %v38
  %v40 = vmul.f32 %v34, %v39
  %v41 = vadd.f32 %v31, %v40
  %42 = vset.pattern.permute.xlu0 2
  %43 = vperm.xlu0 %42, %v15
  %v44 = vpop.permute.xlu0 %43
  %v46 = vlaneseq
  %v47 = vshrl.u32 %v46, 7
  %v48 = vsub.s32 2, %v47
  %v49 = vrot.slane %v16, %v48
  %v50 = vmul.f32 %v44, %v49
  %v51 = vadd.f32 %v41, %v50
  %52 = vset.pattern.permute.xlu0 3
  %53 = vperm.xlu0 %52, %v15
  %v54 = vpop.permute.xlu0 %53
  %v56 = vlaneseq
  %v57 = vshrl.u32 %v56, 7
  %v58 = vsub.s32 3, %v57
  %v59 = vrot.slane %v16, %v58
  %v60 = vmul.f32 %v54, %v59
  %v61 = vadd.f32 %v51, %v60
  %v62 = vmax.f32 %v61, 0.0
  %v63 = vlaneseq
  %v64 = vshrl.u32 %v63, 7
  %v65 = vsub.s32 5, %v64
  %v66 = vrot.slane %v16, %v65
  %v67 = vmul.f32 %v62, %v66
  %vm68 = vcmask 80896
  %v69 = vsel %vm68, %v67, 0.0
  %70 = vadd.xlane.f32.xlu0 %v69
  %v71 = vpop.xlane.xlu0 %70
  %s72 = sld [smem:[#allocation2]]
  %v73 = vstv %s72
  %v74 = vadd.f32 %v71, %v73
  %vm75 = vcmask 7168
  %76 = vst.msk [vmem:[%s3] sm:$0xff] %vm75, %v74
  // Predicated region
  $region14: #{tpu_custom_call.1} parent=0 // pred_check
    _
  $region15: #{tpu_custom_call.1} parent=0 // pred_check_branch
    %78 = sbr.rel (0) target = $region17
  $region16: #{tpu_custom_call.1} parent=0 // pred_region
    _
  $region17: #{tpu_custom_call.1} parent=0 // pred_fallthru
    _
  // Predicated region
  $region18: #{tpu_custom_call.1} parent=0 // pred_check
    _
  $region19: #{tpu_custom_call.1} parent=0 // pred_check_branch
    %80 = sbr.rel (0) target = $region21
  $region20: #{tpu_custom_call.1} parent=0 // pred_region
    _
  $region21: #{tpu_custom_call.1} parent=0 // pred_fallthru
    _

</llo_original>
